<compile_context>
chip_gen: v7x
topology: tpu7x:2x2x1
jax: 0.10.0
libtpu: 0.0.40
codegen_flags: <defaults>
</compile_context>

<pallas_src>
import jax
import jax.numpy as jnp
from jax.experimental import pallas as pl
from jax.experimental.pallas import tpu as pltpu


def _complex_linear_kernel(xr_ref, xi_ref, wr_ref, wi_ref,
                           or_ref, oi_ref, accr_ref, acci_ref):
    # xr/xi: (tm, tk) tiles of x_real / x_imag
    # wr/wi: (tk, tn) tiles of Wr^T / Wi^T
    # or/oi: (tm, tn) tiles of the real / imag outputs
    # accr/acci: f32 accumulators, resident across the K grid axis
    k = pl.program_id(2)

    @pl.when(k == 0)
    def _init():
        accr_ref[...] = jnp.zeros_like(accr_ref)
        acci_ref[...] = jnp.zeros_like(acci_ref)

    xr = xr_ref[...]
    xi = xi_ref[...]
    wr = wr_ref[...]
    wi = wi_ref[...]

    accr_ref[...] += (
        jnp.dot(xr, wr, preferred_element_type=jnp.float32)
        - jnp.dot(xi, wi, preferred_element_type=jnp.float32))
    acci_ref[...] += (
        jnp.dot(xi, wr, preferred_element_type=jnp.float32)
        + jnp.dot(xr, wi, preferred_element_type=jnp.float32))

    @pl.when(k == pl.num_programs(2) - 1)
    def _finalize():
        or_ref[...] = accr_ref[...].astype(or_ref.dtype)
        oi_ref[...] = acci_ref[...].astype(oi_ref.dtype)


def _round_up(x, m):
    return (x + m - 1) // m * m


def _pick_tile(padded_dim, requested, gran):
    """Largest multiple of `gran` that divides `padded_dim` and is <= requested
    (the whole dim if it already fits under `requested`)."""
    if padded_dim <= requested:
        return padded_dim
    q = padded_dim // gran
    for d in range(min(requested // gran, q), 0, -1):
        if q % d == 0:
            return d * gran
    return gran


def complex_linear(x_real, x_imag, w_real, w_imag, *,
                   tm=512, tn=512, tk=None, compute_dtype=None,
                   interpret=False):
    """ComplexLinear forward.

    x_*: (B, in_features); w_*: (out_features, in_features) as in nn.Linear.
    Returns (real, imag), each (B, out_features), in x_real.dtype.
    """
    B, K = x_real.shape
    N, Kw = w_real.shape
    assert Kw == K and x_imag.shape == (B, K) and w_imag.shape == (N, K)

    out_dtype = x_real.dtype
    if compute_dtype is None:
        # bf16 compute (with f32 accumulation) is a precision change vs. the
        # PyTorch f32 reference, so it stays opt-in.
        compute_dtype = x_real.dtype
    compute_dtype = jnp.dtype(compute_dtype)
    if tk is None:
        tk = 1024 if compute_dtype.itemsize < 4 else 512

    # Sublane granularity for M (bf16 packs 16 rows per vreg).
    m_gran = 16 if compute_dtype.itemsize < 4 else 8

    # Minimal alignment padding only; tiles are chosen as divisors of the
    # padded dims, so no additional tile-sized padding is ever introduced.
    Mp = _round_up(B, m_gran)
    Kp = _round_up(K, 128)
    Np = _round_up(N, 128)

    tm = _pick_tile(Mp, tm, m_gran)
    tn = _pick_tile(Np, tn, 128)
    tk = _pick_tile(Kp, tk, 128)

    # v7x megacore: make sure there are >= 2 blocks along a "parallel" axis
    # whenever the problem allows, so both TensorCores get work.
    if (Mp // tm) * (Np // tn) < 2:
        if Np >= 2 * 128:
            tn = _pick_tile(Np, Np // 2, 128)
        elif Mp >= 2 * m_gran:
            tm = _pick_tile(Mp, Mp // 2, m_gran)

    # Weights as (K, N) (MXU-friendly, streamed once per M-pass).
    wr_t = w_real.T.astype(compute_dtype)
    wi_t = w_imag.T.astype(compute_dtype)
    xr = x_real.astype(compute_dtype)
    xi = x_imag.astype(compute_dtype)

    # Zero-pad only when a dim is not already aligned. K (reduction dim) must
    # be zero-padded for correctness; M/N padding is sliced off afterwards.
    if (Mp, Kp) != (B, K):
        pad = ((0, Mp - B), (0, Kp - K))
        xr = jnp.pad(xr, pad)
        xi = jnp.pad(xi, pad)
    if (Kp, Np) != (K, N):
        pad = ((0, Kp - K), (0, Np - N))
        wr_t = jnp.pad(wr_t, pad)
        wi_t = jnp.pad(wi_t, pad)

    grid = (Mp // tm, Np // tn, Kp // tk)

    c_isize = compute_dtype.itemsize
    o_isize = jnp.dtype(out_dtype).itemsize
    cost = pl.CostEstimate(
        flops=4 * 2 * Mp * Np * Kp,
        transcendentals=0,
        bytes_accessed=(2 * Mp * Kp * c_isize * grid[1]     # x, re-read per N pass
                        + 2 * Kp * Np * c_isize * grid[0]   # w, re-read per M pass
                        + 2 * Mp * Np * o_isize))           # outputs

    # Double-buffered inputs/outputs + the two f32 accumulators.
    vmem_bytes = (2 * 2 * tm * tk * c_isize      # x_real / x_imag buffers
                  + 2 * 2 * tk * tn * c_isize    # Wr^T / Wi^T buffers
                  + 2 * 2 * tm * tn * o_isize    # real / imag output buffers
                  + 2 * tm * tn * 4)             # accumulators
    vmem_limit = int(min(max(2 * vmem_bytes, 24 << 20), 40 << 20))

    real_p, imag_p = pl.pallas_call(
        _complex_linear_kernel,
        out_shape=(jax.ShapeDtypeStruct((Mp, Np), out_dtype),
                   jax.ShapeDtypeStruct((Mp, Np), out_dtype)),
        grid_spec=pltpu.PrefetchScalarGridSpec(
            num_scalar_prefetch=0,
            grid=grid,
            in_specs=[
                pl.BlockSpec((tm, tk), lambda i, j, k: (i, k)),
                pl.BlockSpec((tm, tk), lambda i, j, k: (i, k)),
                pl.BlockSpec((tk, tn), lambda i, j, k: (k, j)),
                pl.BlockSpec((tk, tn), lambda i, j, k: (k, j)),
            ],
            out_specs=[
                pl.BlockSpec((tm, tn), lambda i, j, k: (i, j)),
                pl.BlockSpec((tm, tn), lambda i, j, k: (i, j)),
            ],
            scratch_shapes=[pltpu.VMEM((tm, tn), jnp.float32),
                            pltpu.VMEM((tm, tn), jnp.float32)],
        ),
        compiler_params=pltpu.CompilerParams(
            dimension_semantics=("parallel", "parallel", "arbitrary"),
            vmem_limit_bytes=vmem_limit,
        ),
        cost_estimate=cost,
        interpret=interpret,
    )(xr, xi, wr_t, wi_t)

    if (Mp, Np) != (B, N):
        real_p = real_p[:B, :N]
        imag_p = imag_p[:B, :N]
    return real_p, imag_p


def _reference(x_real, x_imag, w_real, w_imag):
    real = x_real @ w_real.T - x_imag @ w_imag.T
    imag = x_imag @ w_real.T + x_real @ w_imag.T
    return real, imag


if __name__ == "__main__":
    key = jax.random.PRNGKey(0)
    k1, k2, k3, k4, k5, k6, k7, k8 = jax.random.split(key, 8)

    # --- Small shape consistent with the module (f32 path) ------------------
    B, in_features, out_features = 8, 32, 32
    bound = 1.0 / (in_features ** 0.5)
    w_real = jax.random.uniform(k1, (out_features, in_features), jnp.float32,
                                -bound, bound)
    w_imag = jax.random.uniform(k2, (out_features, in_features), jnp.float32,
                                -bound, bound)
    x_real = jax.random.normal(k3, (B, in_features), jnp.float32)
    x_imag = jax.random.normal(k4, (B, in_features), jnp.float32)

    real, imag = complex_linear(x_real, x_imag, w_real, w_imag)
    jax.block_until_ready((real, imag))
    real_ref, imag_ref = _reference(x_real, x_imag, w_real, w_imag)
    assert jnp.allclose(real, real_ref, atol=1e-5, rtol=1e-5)
    assert jnp.allclose(imag, imag_ref, atol=1e-5, rtol=1e-5)

    # --- bf16 compute path (opt-in), loose tolerance -------------------------
    real_bf, imag_bf = complex_linear(x_real, x_imag, w_real, w_imag,
                                      compute_dtype=jnp.bfloat16)
    jax.block_until_ready((real_bf, imag_bf))
    assert jnp.allclose(real_bf, real_ref, atol=5e-2, rtol=5e-2)
    assert jnp.allclose(imag_bf, imag_ref, atol=5e-2, rtol=5e-2)

    # --- Modest ragged shape exercising M/N/K tiling + minimal padding ------
    B2, K2, N2 = 272, 384, 192          # non-multiples of the default tiles
    bound2 = 1.0 / (K2 ** 0.5)
    w_real2 = jax.random.uniform(k5, (N2, K2), jnp.float32, -bound2, bound2)
    w_imag2 = jax.random.uniform(k6, (N2, K2), jnp.float32, -bound2, bound2)
    x_real2 = jax.random.normal(k7, (B2, K2), jnp.float32)
    x_imag2 = jax.random.normal(k8, (B2, K2), jnp.float32)

    real2, imag2 = complex_linear(x_real2, x_imag2, w_real2, w_imag2)
    jax.block_until_ready((real2, imag2))
    real2_ref, imag2_ref = _reference(x_real2, x_imag2, w_real2, w_imag2)
    assert jnp.allclose(real2, real2_ref, atol=1e-4, rtol=1e-4)
    assert jnp.allclose(imag2, imag2_ref, atol=1e-4, rtol=1e-4)

    print("KERNEL_OK")
</pallas_src>

<mosaic_0001>
module attributes {stable_mosaic.version = 11 : i64} {
  func.func @_complex_linear_kernel(%arg0: i32, %arg1: i32, %arg2: i32, %arg3: memref<8x128xf32, #tpu.memory_space<vmem>>, %arg4: memref<8x128xf32, #tpu.memory_space<vmem>>, %arg5: memref<128x128xf32, #tpu.memory_space<vmem>>, %arg6: memref<128x128xf32, #tpu.memory_space<vmem>>, %arg7: memref<8x128xf32, #tpu.memory_space<vmem>>, %arg8: memref<8x128xf32, #tpu.memory_space<vmem>>, %arg9: memref<8x128xf32, #tpu.memory_space<vmem>>, %arg10: memref<8x128xf32, #tpu.memory_space<vmem>>) attributes {dimension_semantics = [#tpu.dimension_semantics<parallel>, #tpu.dimension_semantics<parallel>, #tpu.dimension_semantics<arbitrary>], iteration_bounds = array<i64: 1, 1, 1>, scalar_prefetch = 0 : i64, scratch_operands = 2 : i64, tpu.core_type = #tpu.core_type<tc>, window_params = [{transform_indices = @transform_0, window_bounds = array<i64: 8, 128>}, {transform_indices = @transform_1, window_bounds = array<i64: 8, 128>}, {transform_indices = @transform_2, window_bounds = array<i64: 128, 128>}, {transform_indices = @transform_3, window_bounds = array<i64: 128, 128>}, {transform_indices = @transform_4, window_bounds = array<i64: 8, 128>}, {transform_indices = @transform_5, window_bounds = array<i64: 8, 128>}]} {
    %c0_i32 = arith.constant 0 : i32
    %0 = arith.cmpi eq, %arg2, %c0_i32 : i32
    %1 = arith.extui %0 : i1 to i32
    %c0_i32_0 = arith.constant 0 : i32
    %2 = arith.cmpi ne, %1, %c0_i32_0 : i32
    scf.if %2 {
      %cst_21 = arith.constant 0.000000e+00 : f32
      %22 = vector.broadcast %cst_21 : f32 to vector<8x128xf32>
      %c0_22 = arith.constant 0 : index
      %c0_23 = arith.constant 0 : index
      %23 = vector.load %arg9[%c0_22, %c0_23] : memref<8x128xf32, #tpu.memory_space<vmem>>, vector<8x128xf32>
      tpu.vector_store %arg9[%c0_22, %c0_23], %22 {strides = array<i32>} : memref<8x128xf32, #tpu.memory_space<vmem>>, vector<8x128xf32>,
      %cst_24 = arith.constant 0.000000e+00 : f32
      %24 = vector.broadcast %cst_24 : f32 to vector<8x128xf32>
      %c0_25 = arith.constant 0 : index
      %c0_26 = arith.constant 0 : index
      %25 = vector.load %arg10[%c0_25, %c0_26] : memref<8x128xf32, #tpu.memory_space<vmem>>, vector<8x128xf32>
      tpu.vector_store %arg10[%c0_25, %c0_26], %24 {strides = array<i32>} : memref<8x128xf32, #tpu.memory_space<vmem>>, vector<8x128xf32>,
    } else {
    }
    %c0 = arith.constant 0 : index
    %c0_1 = arith.constant 0 : index
    %3 = vector.load %arg3[%c0, %c0_1] : memref<8x128xf32, #tpu.memory_space<vmem>>, vector<8x128xf32>
    %c0_2 = arith.constant 0 : index
    %c0_3 = arith.constant 0 : index
    %4 = vector.load %arg4[%c0_2, %c0_3] : memref<8x128xf32, #tpu.memory_space<vmem>>, vector<8x128xf32>
    %c0_4 = arith.constant 0 : index
    %c0_5 = arith.constant 0 : index
    %5 = vector.load %arg5[%c0_4, %c0_5] : memref<128x128xf32, #tpu.memory_space<vmem>>, vector<128x128xf32>
    %c0_6 = arith.constant 0 : index
    %c0_7 = arith.constant 0 : index
    %6 = vector.load %arg6[%c0_6, %c0_7] : memref<128x128xf32, #tpu.memory_space<vmem>>, vector<128x128xf32>
    %c0_8 = arith.constant 0 : index
    %c0_9 = arith.constant 0 : index
    %7 = vector.load %arg9[%c0_8, %c0_9] : memref<8x128xf32, #tpu.memory_space<vmem>>, vector<8x128xf32>
    %cst = arith.constant dense<0.000000e+00> : vector<8x128xf32>
    %8 = tpu.matmul %3, %5, %cst {dimension_numbers = #tpu.dot_dimension_numbers<[1], [0], [0], [1], [0, 0, 1, 1], [], []>} : vector<8x128xf32>, vector<128x128xf32>, vector<8x128xf32> -> vector<8x128xf32>
    %cst_10 = arith.constant dense<0.000000e+00> : vector<8x128xf32>
    %9 = tpu.matmul %4, %6, %cst_10 {dimension_numbers = #tpu.dot_dimension_numbers<[1], [0], [0], [1], [0, 0, 1, 1], [], []>} : vector<8x128xf32>, vector<128x128xf32>, vector<8x128xf32> -> vector<8x128xf32>
    %10 = arith.subf %8, %9 : vector<8x128xf32>
    %11 = arith.addf %7, %10 : vector<8x128xf32>
    %c0_11 = arith.constant 0 : index
    %c0_12 = arith.constant 0 : index
    %12 = vector.load %arg9[%c0_11, %c0_12] : memref<8x128xf32, #tpu.memory_space<vmem>>, vector<8x128xf32>
    tpu.vector_store %arg9[%c0_11, %c0_12], %11 {strides = array<i32>} : memref<8x128xf32, #tpu.memory_space<vmem>>, vector<8x128xf32>,
    %c0_13 = arith.constant 0 : index
    %c0_14 = arith.constant 0 : index
    %13 = vector.load %arg10[%c0_13, %c0_14] : memref<8x128xf32, #tpu.memory_space<vmem>>, vector<8x128xf32>
    %cst_15 = arith.constant dense<0.000000e+00> : vector<8x128xf32>
    %14 = tpu.matmul %4, %5, %cst_15 {dimension_numbers = #tpu.dot_dimension_numbers<[1], [0], [0], [1], [0, 0, 1, 1], [], []>} : vector<8x128xf32>, vector<128x128xf32>, vector<8x128xf32> -> vector<8x128xf32>
    %cst_16 = arith.constant dense<0.000000e+00> : vector<8x128xf32>
    %15 = tpu.matmul %3, %6, %cst_16 {dimension_numbers = #tpu.dot_dimension_numbers<[1], [0], [0], [1], [0, 0, 1, 1], [], []>} : vector<8x128xf32>, vector<128x128xf32>, vector<8x128xf32> -> vector<8x128xf32>
    %16 = arith.addf %14, %15 : vector<8x128xf32>
    %17 = arith.addf %13, %16 : vector<8x128xf32>
    %c0_17 = arith.constant 0 : index
    %c0_18 = arith.constant 0 : index
    %18 = vector.load %arg10[%c0_17, %c0_18] : memref<8x128xf32, #tpu.memory_space<vmem>>, vector<8x128xf32>
    tpu.vector_store %arg10[%c0_17, %c0_18], %17 {strides = array<i32>} : memref<8x128xf32, #tpu.memory_space<vmem>>, vector<8x128xf32>,
    %c0_i32_19 = arith.constant 0 : i32
    %19 = arith.cmpi eq, %arg2, %c0_i32_19 : i32
    %20 = arith.extui %19 : i1 to i32
    %c0_i32_20 = arith.constant 0 : i32
    %21 = arith.cmpi ne, %20, %c0_i32_20 : i32
    scf.if %21 {
      %c0_21 = arith.constant 0 : index
      %c0_22 = arith.constant 0 : index
      %22 = vector.load %arg9[%c0_21, %c0_22] : memref<8x128xf32, #tpu.memory_space<vmem>>, vector<8x128xf32>
      %c0_23 = arith.constant 0 : index
      %c0_24 = arith.constant 0 : index
      %23 = vector.load %arg7[%c0_23, %c0_24] : memref<8x128xf32, #tpu.memory_space<vmem>>, vector<8x128xf32>
      tpu.vector_store %arg7[%c0_23, %c0_24], %22 {strides = array<i32>} : memref<8x128xf32, #tpu.memory_space<vmem>>, vector<8x128xf32>,
      %c0_25 = arith.constant 0 : index
      %c0_26 = arith.constant 0 : index
      %24 = vector.load %arg10[%c0_25, %c0_26] : memref<8x128xf32, #tpu.memory_space<vmem>>, vector<8x128xf32>
      %c0_27 = arith.constant 0 : index
      %c0_28 = arith.constant 0 : index
      %25 = vector.load %arg8[%c0_27, %c0_28] : memref<8x128xf32, #tpu.memory_space<vmem>>, vector<8x128xf32>
      tpu.vector_store %arg8[%c0_27, %c0_28], %24 {strides = array<i32>} : memref<8x128xf32, #tpu.memory_space<vmem>>, vector<8x128xf32>,
    } else {
    }
    return
  }
  func.func @transform_0(%arg0: i32, %arg1: i32, %arg2: i32) -> (i32, i32) {
    %c0_i32 = arith.constant 0 : i32
    return %arg0, %arg2 : i32, i32
  }
  func.func @transform_1(%arg0: i32, %arg1: i32, %arg2: i32) -> (i32, i32) {
    %c0_i32 = arith.constant 0 : i32
    return %arg0, %arg2 : i32, i32
  }
  func.func @transform_2(%arg0: i32, %arg1: i32, %arg2: i32) -> (i32, i32) {
    %c0_i32 = arith.constant 0 : i32
    return %arg2, %arg1 : i32, i32
  }
  func.func @transform_3(%arg0: i32, %arg1: i32, %arg2: i32) -> (i32, i32) {
    %c0_i32 = arith.constant 0 : i32
    return %arg2, %arg1 : i32, i32
  }
  func.func @transform_4(%arg0: i32, %arg1: i32, %arg2: i32) -> (i32, i32) {
    %c0_i32 = arith.constant 0 : i32
    return %arg0, %arg1 : i32, i32
  }
  func.func @transform_5(%arg0: i32, %arg1: i32, %arg2: i32) -> (i32, i32) {
    %c0_i32 = arith.constant 0 : i32
    return %arg0, %arg1 : i32, i32
  }
}

</mosaic_0001>

<llo_original>
// kernel: tpu_custom_call.1
$region0: #{tpu_custom_call.1}
  #allocation0 [shape = 'u32[]', space=smem, size = 0x4, offset = 0x4, fixed_abs, tag = 'smem constant byte address 0x4 - core index']
  #allocation1 [shape = 'u32[144,128]{1,0:T(1,128)}', space=vmem, size = 0x12000, scoped, tag = 'internal scratch']
  #allocation2 [shape = 'f32[8,128]{1,0:T(8,128)}', space=vmem, size = 0x1000, scoped, tag = 'scratch operand']
  #allocation3 [shape = 'f32[8,128]{1,0:T(8,128)}', space=vmem, size = 0x1000, scoped, tag = 'scratch operand']
  %s0 = inlined_call_operand.hbm [shape: f32[8,128], index: 0, kind: input, shape index: {}]
  %s1 = inlined_call_operand.hbm [shape: f32[8,128], index: 1, kind: input, shape index: {}]
  %s2 = inlined_call_operand.hbm [shape: f32[128,128], index: 2, kind: input, shape index: {}]
  %s3 = inlined_call_operand.hbm [shape: f32[128,128], index: 3, kind: input, shape index: {}]
  %s4 = inlined_call_operand.hbm [shape: f32[8,128], index: 4, kind: output, shape index: {0}]
  %s5 = inlined_call_operand.hbm [shape: f32[8,128], index: 5, kind: output, shape index: {1}]
  %6 = xla_tuple %s4, %s5
  %s7 = sld [smem:[#allocation0]]
  $region58: #{tpu_custom_call.1} parent=0
    _
  %s9 = ssub.s32 1, %s7
  %s10 = scalar_select 0, %s9, %s7
  $region1: #{tpu_custom_call.1} parent=0
    #allocation4 [shape = 'u8[4096]{0}', space=vmem, size = 0x1000, scoped, tag = 'input window, operand 0, single buffered']
    #allocation5 [shape = 's32[1]{0}', space=sflag, size = 0x4, scoped, tag = 'scoped memory for tpu_custom_call.1']
    #allocation6 [shape = 's32[1]{0}', space=sflag, size = 0x4, scoped, tag = 'scoped memory for tpu_custom_call.1']
    #allocation7 [shape = 'u8[4096]{0}', space=vmem, size = 0x1000, scoped, tag = 'input window, operand 1, single buffered']
    #allocation8 [shape = 's32[1]{0}', space=sflag, size = 0x4, scoped, tag = 'scoped memory for tpu_custom_call.1']
    #allocation9 [shape = 'u8[65536]{0}', space=vmem, size = 0x10000, scoped, tag = 'input window, operand 2, single buffered']
    #allocation10 [shape = 'u8[65536]{0}', space=vmem, size = 0x10000, scoped, tag = 'input window, operand 3, single buffered']
    #allocation11 [shape = 's32[1]{0}', space=sflag, size = 0x4, scoped, tag = 'scoped memory for tpu_custom_call.1']
    #allocation12 [shape = 'u8[4096]{0}', space=vmem, size = 0x1000, scoped, tag = 'output window, operand 0, single buffered']
    #allocation13 [shape = 'u8[4096]{0}', space=vmem, size = 0x1000, scoped, tag = 'output window, operand 1, single buffered']
    #allocation14 [shape = 's32[1]{0}', space=sflag, size = 0x4, scoped, tag = 'scoped memory for tpu_custom_call.1']
    %11 = vsyncpa [#allocation5], 0
    %12 = vsyncpa [#allocation8], 0
    %13 = vsyncpa [#allocation11], 0
    %14 = vsyncpa [#allocation6], 0
    %15 = vsyncpa [#allocation14], 0
    // Predicated region
    $region2: #{tpu_custom_call.1} parent=1 // pred_check
      _
    $region3: #{tpu_custom_call.1} parent=1 // pred_check_branch
      %17 = sbr.rel (0) target = $region5
    $region4: #{tpu_custom_call.1} parent=1 // pred_region
      %s19 = ssub.s32 128, 128
      %20 = vsyncadd [#allocation5], %s19
      %s22 = sshll.u32 [#allocation4], 4
      %s23 = int_to_ptr.vmem [resolvable:$true] %s22
      %25 = dma.hbm_to_vmem [thread:$0]  %s0, 128, %s23, [#allocation5]
    $region5: #{tpu_custom_call.1} parent=1 // pred_fallthru
      _
    // Predicated region
    $region6: #{tpu_custom_call.1} parent=1 // pred_check
      _
    $region7: #{tpu_custom_call.1} parent=1 // pred_check_branch
      %27 = sbr.rel (0) target = $region9
    $region8: #{tpu_custom_call.1} parent=1 // pred_region
      %s29 = ssub.s32 128, 128
      %30 = vsyncadd [#allocation8], %s29
      %s32 = sshll.u32 [#allocation7], 4
      %s33 = int_to_ptr.vmem [resolvable:$true] %s32
      %35 = dma.hbm_to_vmem [thread:$0]  %s1, 128, %s33, [#allocation8]
    $region9: #{tpu_custom_call.1} parent=1 // pred_fallthru
      _
    // Predicated region
    $region10: #{tpu_custom_call.1} parent=1 // pred_check
      _
    $region11: #{tpu_custom_call.1} parent=1 // pred_check_branch
      %37 = sbr.rel (0) target = $region13
    $region12: #{tpu_custom_call.1} parent=1 // pred_region
      %s39 = ssub.s32 2048, 2048
      %40 = vsyncadd [#allocation8], %s39
      %s41 = sshll.u32 [#allocation9], 4
      %s42 = int_to_ptr.vmem [resolvable:$true] %s41
      %47 = dma.hbm_to_vmem [thread:$0]  %s2, 2048, %s42, [#allocation8], 128, 128, 8
    $region13: #{tpu_custom_call.1} parent=1 // pred_fallthru
      _
    // Predicated region
    $region14: #{tpu_custom_call.1} parent=1 // pred_check
      _
    $region15: #{tpu_custom_call.1} parent=1 // pred_check_branch
      %49 = sbr.rel (0) target = $region17
    $region16: #{tpu_custom_call.1} parent=1 // pred_region
      %s51 = ssub.s32 2048, 2048
      %52 = vsyncadd [#allocation11], %s51
      %s53 = sshll.u32 [#allocation10], 4
      %s54 = int_to_ptr.vmem [resolvable:$true] %s53
      %59 = dma.hbm_to_vmem [thread:$0]  %s3, 2048, %s54, [#allocation11], 128, 128, 8
    $region17: #{tpu_custom_call.1} parent=1 // pred_fallthru
      _
    // Predicated region
    $region18: #{tpu_custom_call.1} parent=1 // pred_check
      _
    $region19: #{tpu_custom_call.1} parent=1 // pred_check_branch
      %61 = sbr.rel (0) target = $region21
    $region20: #{tpu_custom_call.1} parent=1 // pred_region
      %62 = dma.done [#allocation5], 128
    $region21: #{tpu_custom_call.1} parent=1 // pred_fallthru
      _
    // Predicated region
    $region22: #{tpu_custom_call.1} parent=1 // pred_check
      _
    $region23: #{tpu_custom_call.1} parent=1 // pred_check_branch
      %64 = sbr.rel (0) target = $region25
    $region24: #{tpu_custom_call.1} parent=1 // pred_region
      %65 = dma.done [#allocation8], 128
    $region25: #{tpu_custom_call.1} parent=1 // pred_fallthru
      _
    // Predicated region
    $region26: #{tpu_custom_call.1} parent=1 // pred_check
      _
    $region27: #{tpu_custom_call.1} parent=1 // pred_check_branch
      %67 = sbr.rel (0) target = $region29
    $region28: #{tpu_custom_call.1} parent=1 // pred_region
      %68 = dma.done [#allocation8], 2048
    $region29: #{tpu_custom_call.1} parent=1 // pred_fallthru
      _
    // Predicated region
    $region30: #{tpu_custom_call.1} parent=1 // pred_check
      _
    $region31: #{tpu_custom_call.1} parent=1 // pred_check_branch
      %70 = sbr.rel (0) target = $region33
    $region32: #{tpu_custom_call.1} parent=1 // pred_region
      %71 = dma.done [#allocation11], 2048
    $region33: #{tpu_custom_call.1} parent=1 // pred_fallthru
      _
    %p72 = scmp.eq.s32.totalorder 0, 0
    // Predicated region
    $region34: #{tpu_custom_call.1} parent=1 // pred_check
      %p73 = pneg %p72
    $region35: #{tpu_custom_call.1} parent=1 // pred_check_branch
      %75 = sbr.rel (%p73) target = $region37
    $region36: #{tpu_custom_call.1} parent=1 // pred_region
      %76 = vst [vmem:[#allocation2] sm:$0xff] 0.0
      %77 = vst [vmem:[#allocation3] sm:$0xff] 0.0
    $region37: #{tpu_custom_call.1} parent=1 // pred_fallthru
      _
    %v78 = vld [vmem:[#allocation4] sm:$0xff]
    %v79 = vld [vmem:[#allocation7] sm:$0xff]
    %v80 = vld [vmem:[#allocation9] sm:$0xff]
    %v81 = vld [vmem:[#allocation9 + $0x8] sm:$0xff]
    %v82 = vld [vmem:[#allocation9 + $0x10] sm:$0xff]
    %v83 = vld [vmem:[#allocation9 + $0x18] sm:$0xff]
    %v84 = vld [vmem:[#allocation9 + $0x20] sm:$0xff]
    %v85 = vld [vmem:[#allocation9 + $0x28] sm:$0xff]
    %v86 = vld [vmem:[#allocation9 + $0x30] sm:$0xff]
    %v87 = vld [vmem:[#allocation9 + $0x38] sm:$0xff]
    %v88 = vld [vmem:[#allocation9 + $0x40] sm:$0xff]
    %v89 = vld [vmem:[#allocation9 + $0x48] sm:$0xff]
    %v90 = vld [vmem:[#allocation9 + $0x50] sm:$0xff]
    %v91 = vld [vmem:[#allocation9 + $0x58] sm:$0xff]
    %v92 = vld [vmem:[#allocation9 + $0x60] sm:$0xff]
    %v93 = vld [vmem:[#allocation9 + $0x68] sm:$0xff]
    %v94 = vld [vmem:[#allocation9 + $0x70] sm:$0xff]
    %v95 = vld [vmem:[#allocation9 + $0x78] sm:$0xff]
    %v96 = vld [vmem:[#allocation10] sm:$0xff]
    %v97 = vld [vmem:[#allocation10 + $0x8] sm:$0xff]
    %v98 = vld [vmem:[#allocation10 + $0x10] sm:$0xff]
    %v99 = vld [vmem:[#allocation10 + $0x18] sm:$0xff]
    %v100 = vld [vmem:[#allocation10 + $0x20] sm:$0xff]
    %v101 = vld [vmem:[#allocation10 + $0x28] sm:$0xff]
    %v102 = vld [vmem:[#allocation10 + $0x30] sm:$0xff]
    %v103 = vld [vmem:[#allocation10 + $0x38] sm:$0xff]
    %v104 = vld [vmem:[#allocation10 + $0x40] sm:$0xff]
    %v105 = vld [vmem:[#allocation10 + $0x48] sm:$0xff]
    %v106 = vld [vmem:[#allocation10 + $0x50] sm:$0xff]
    %v107 = vld [vmem:[#allocation10 + $0x58] sm:$0xff]
    %v108 = vld [vmem:[#allocation10 + $0x60] sm:$0xff]
    %v109 = vld [vmem:[#allocation10 + $0x68] sm:$0xff]
    %v110 = vld [vmem:[#allocation10 + $0x70] sm:$0xff]
    %v111 = vld [vmem:[#allocation10 + $0x78] sm:$0xff]
    %v112 = vld [vmem:[#allocation2] sm:$0xff]
    %113 = vmatprep.subr.mxu0 0.0
    %114 = vmatpush1.msra.mxu0 %v80
    %115 = vmatprep.subr.mxu0 0.0
    %116 = vmatpush1.msra.mxu0 %v81
    %117 = vmatprep.subr.mxu0 0.0
    %118 = vmatpush1.msra.mxu0 %v82
    %119 = vmatprep.subr.mxu0 0.0
    %120 = vmatpush1.msra.mxu0 %v83
    %121 = vmatprep.subr.mxu0 0.0
    %122 = vmatpush1.msra.mxu0 %v84
    %123 = vmatprep.subr.mxu0 0.0
    %124 = vmatpush1.msra.mxu0 %v85
    %125 = vmatprep.subr.mxu0 0.0
    %126 = vmatpush1.msra.mxu0 %v86
    %127 = vmatprep.subr.mxu0 0.0
    %128 = vmatpush1.msra.mxu0 %v87
    %129 = vmatprep.subr.mxu0 0.0
    %130 = vmatpush1.msra.mxu0 %v88
    %131 = vmatprep.subr.mxu0 0.0
    %132 = vmatpush1.msra.mxu0 %v89
    %133 = vmatprep.subr.mxu0 0.0
    %134 = vmatpush1.msra.mxu0 %v90
    %135 = vmatprep.subr.mxu0 0.0
    %136 = vmatpush1.msra.mxu0 %v91
    %137 = vmatprep.subr.mxu0 0.0
    %138 = vmatpush1.msra.mxu0 %v92
    %139 = vmatprep.subr.mxu0 0.0
    %140 = vmatpush1.msra.mxu0 %v93
    %141 = vmatprep.subr.mxu0 0.0
    %142 = vmatpush1.msra.mxu0 %v94
    %143 = vmatprep.subr.mxu0 0.0
    %144 = vmatpush1.msra.mxu0 %v95
    %145 = vmatprep.subr.mxu0 0.0
    %146 = vmatpush1.msra.mxu0 0.0
    %147 = vmatprep.subr.mxu0 0.0
    %148 = vmatpush1.msra.mxu0 0.0
    %149 = vmatprep.subr.mxu0 0.0
    %150 = vmatpush1.msra.mxu0 0.0
    %151 = vmatprep.subr.mxu0 0.0
    %152 = vmatpush1.msra.mxu0 0.0
    %153 = vmatprep.subr.mxu0 0.0
    %154 = vmatpush1.msra.mxu0 0.0
    %155 = vmatprep.subr.mxu0 0.0
    %156 = vmatpush1.msra.mxu0 0.0
    %157 = vmatprep.subr.mxu0 0.0
    %158 = vmatpush1.msra.mxu0 0.0
    %159 = vmatprep.subr.mxu0 0.0
    %160 = vmatpush1.msra.mxu0 0.0
    %161 = vmatprep.subr.mxu0 0.0
    %162 = vmatpush1.msra.mxu0 0.0
    %163 = vmatprep.subr.mxu0 0.0
    %164 = vmatpush1.msra.mxu0 0.0
    %165 = vmatprep.subr.mxu0 0.0
    %166 = vmatpush1.msra.mxu0 0.0
    %167 = vmatprep.subr.mxu0 0.0
    %168 = vmatpush1.msra.mxu0 0.0
    %169 = vmatprep.subr.mxu0 0.0
    %170 = vmatpush1.msra.mxu0 0.0
    %171 = vmatprep.subr.mxu0 0.0
    %172 = vmatpush1.msra.mxu0 0.0
    %173 = vmatprep.subr.mxu0 0.0
    %174 = vmatpush1.msra.mxu0 0.0
    %175 = vmatprep.subr.mxu0 0.0
    %176 = vmatpush1.msra.mxu0 0.0
    %177 = vmatprep.mubr.f32.mxu0 0.0
    %178 = vmatmul.mubr.f32.gmra.mrb[0].mxu0 %v78
    %v179 = vpop.f32.mrb[0].mxu0
    %v180 = vadd.f32 0.0, %v179
    %v181 = vpop.f32.mrb[0].mxu0
    %182 = vdwg.mxu0
    %183 = vmatprep.subr.mxu0 0.0
    %184 = vmatpush1.msra.mxu0 %v96
    %185 = vmatprep.subr.mxu0 0.0
    %186 = vmatpush1.msra.mxu0 %v97
    %187 = vmatprep.subr.mxu0 0.0
    %188 = vmatpush1.msra.mxu0 %v98
    %189 = vmatprep.subr.mxu0 0.0
    %190 = vmatpush1.msra.mxu0 %v99
    %191 = vmatprep.subr.mxu0 0.0
    %192 = vmatpush1.msra.mxu0 %v100
    %193 = vmatprep.subr.mxu0 0.0
    %194 = vmatpush1.msra.mxu0 %v101
    %195 = vmatprep.subr.mxu0 0.0
    %196 = vmatpush1.msra.mxu0 %v102
    %197 = vmatprep.subr.mxu0 0.0
    %198 = vmatpush1.msra.mxu0 %v103
    %199 = vmatprep.subr.mxu0 0.0
    %200 = vmatpush1.msra.mxu0 %v104
    %201 = vmatprep.subr.mxu0 0.0
    %202 = vmatpush1.msra.mxu0 %v105
    %203 = vmatprep.subr.mxu0 0.0
    %204 = vmatpush1.msra.mxu0 %v106
    %205 = vmatprep.subr.mxu0 0.0
    %206 = vmatpush1.msra.mxu0 %v107
    %207 = vmatprep.subr.mxu0 0.0
    %208 = vmatpush1.msra.mxu0 %v108
    %209 = vmatprep.subr.mxu0 0.0
    %210 = vmatpush1.msra.mxu0 %v109
    %211 = vmatprep.subr.mxu0 0.0
    %212 = vmatpush1.msra.mxu0 %v110
    %213 = vmatprep.subr.mxu0 0.0
    %214 = vmatpush1.msra.mxu0 %v111
    %215 = vmatprep.subr.mxu0 0.0
    %216 = vmatpush1.msra.mxu0 0.0
    %217 = vmatprep.subr.mxu0 0.0
    %218 = vmatpush1.msra.mxu0 0.0
    %219 = vmatprep.subr.mxu0 0.0
    %220 = vmatpush1.msra.mxu0 0.0
    %221 = vmatprep.subr.mxu0 0.0
    %222 = vmatpush1.msra.mxu0 0.0
    %223 = vmatprep.subr.mxu0 0.0
    %224 = vmatpush1.msra.mxu0 0.0
    %225 = vmatprep.subr.mxu0 0.0
    %226 = vmatpush1.msra.mxu0 0.0
    %227 = vmatprep.subr.mxu0 0.0
    %228 = vmatpush1.msra.mxu0 0.0
    %229 = vmatprep.subr.mxu0 0.0
    %230 = vmatpush1.msra.mxu0 0.0
    %231 = vmatprep.subr.mxu0 0.0
    %232 = vmatpush1.msra.mxu0 0.0
    %233 = vmatprep.subr.mxu0 0.0
    %234 = vmatpush1.msra.mxu0 0.0
    %235 = vmatprep.subr.mxu0 0.0
    %236 = vmatpush1.msra.mxu0 0.0
    %237 = vmatprep.subr.mxu0 0.0
    %238 = vmatpush1.msra.mxu0 0.0
    %239 = vmatprep.subr.mxu0 0.0
    %240 = vmatpush1.msra.mxu0 0.0
    %241 = vmatprep.subr.mxu0 0.0
    %242 = vmatpush1.msra.mxu0 0.0
    %243 = vmatprep.subr.mxu0 0.0
    %244 = vmatpush1.msra.mxu0 0.0
    %245 = vmatprep.subr.mxu0 0.0
    %246 = vmatpush1.msra.mxu0 0.0
    %247 = vmatprep.mubr.f32.mxu0 0.0
    %248 = vmatmul.mubr.f32.gmra.mrb[0].mxu0 %v79
    %v249 = vpop.f32.mrb[0].mxu0
    %v250 = vadd.f32 0.0, %v249
    %v251 = vpop.f32.mrb[0].mxu0
    %252 = vdwg.mxu0
    %v253 = vsub.f32 %v180, %v250
    %v254 = vadd.f32 %v112, %v253
    %255 = vst [vmem:[#allocation2] sm:$0xff] %v254
    %v256 = vld [vmem:[#allocation3] sm:$0xff]
    %257 = vmatprep.subr.mxu0 0.0
    %258 = vmatpush1.msra.mxu0 %v96
    %259 = vmatprep.subr.mxu0 0.0
    %260 = vmatpush1.msra.mxu0 %v97
    %261 = vmatprep.subr.mxu0 0.0
    %262 = vmatpush1.msra.mxu0 %v98
    %263 = vmatprep.subr.mxu0 0.0
    %264 = vmatpush1.msra.mxu0 %v99
    %265 = vmatprep.subr.mxu0 0.0
    %266 = vmatpush1.msra.mxu0 %v100
    %267 = vmatprep.subr.mxu0 0.0
    %268 = vmatpush1.msra.mxu0 %v101
    %269 = vmatprep.subr.mxu0 0.0
    %270 = vmatpush1.msra.mxu0 %v102
    %271 = vmatprep.subr.mxu0 0.0
    %272 = vmatpush1.msra.mxu0 %v103
    %273 = vmatprep.subr.mxu0 0.0
    %274 = vmatpush1.msra.mxu0 %v104
    %275 = vmatprep.subr.mxu0 0.0
    %276 = vmatpush1.msra.mxu0 %v105
    %277 = vmatprep.subr.mxu0 0.0
    %278 = vmatpush1.msra.mxu0 %v106
    %279 = vmatprep.subr.mxu0 0.0
    %280 = vmatpush1.msra.mxu0 %v107
    %281 = vmatprep.subr.mxu0 0.0
    %282 = vmatpush1.msra.mxu0 %v108
    %283 = vmatprep.subr.mxu0 0.0
    %284 = vmatpush1.msra.mxu0 %v109
    %285 = vmatprep.subr.mxu0 0.0
    %286 = vmatpush1.msra.mxu0 %v110
    %287 = vmatprep.subr.mxu0 0.0
    %288 = vmatpush1.msra.mxu0 %v111
    %289 = vmatprep.subr.mxu0 0.0
    %290 = vmatpush1.msra.mxu0 0.0
    %291 = vmatprep.subr.mxu0 0.0
    %292 = vmatpush1.msra.mxu0 0.0
    %293 = vmatprep.subr.mxu0 0.0
    %294 = vmatpush1.msra.mxu0 0.0
    %295 = vmatprep.subr.mxu0 0.0
    %296 = vmatpush1.msra.mxu0 0.0
    %297 = vmatprep.subr.mxu0 0.0
    %298 = vmatpush1.msra.mxu0 0.0
    %299 = vmatprep.subr.mxu0 0.0
    %300 = vmatpush1.msra.mxu0 0.0
    %301 = vmatprep.subr.mxu0 0.0
    %302 = vmatpush1.msra.mxu0 0.0
    %303 = vmatprep.subr.mxu0 0.0
    %304 = vmatpush1.msra.mxu0 0.0
    %305 = vmatprep.subr.mxu0 0.0
    %306 = vmatpush1.msra.mxu0 0.0
    %307 = vmatprep.subr.mxu0 0.0
    %308 = vmatpush1.msra.mxu0 0.0
    %309 = vmatprep.subr.mxu0 0.0
    %310 = vmatpush1.msra.mxu0 0.0
    %311 = vmatprep.subr.mxu0 0.0
    %312 = vmatpush1.msra.mxu0 0.0
    %313 = vmatprep.subr.mxu0 0.0
    %314 = vmatpush1.msra.mxu0 0.0
    %315 = vmatprep.subr.mxu0 0.0
    %316 = vmatpush1.msra.mxu0 0.0
    %317 = vmatprep.subr.mxu0 0.0
    %318 = vmatpush1.msra.mxu0 0.0
    %319 = vmatprep.subr.mxu0 0.0
    %320 = vmatpush1.msra.mxu0 0.0
    %321 = vmatprep.mubr.f32.mxu0 0.0
    %322 = vmatmul.mubr.f32.gmra.mrb[0].mxu0 %v78
    %v323 = vpop.f32.mrb[0].mxu0
    %v324 = vadd.f32 0.0, %v323
    %v325 = vpop.f32.mrb[0].mxu0
    %326 = vdwg.mxu0
    %327 = vmatprep.subr.mxu0 0.0
    %328 = vmatpush1.msra.mxu0 %v80
    %329 = vmatprep.subr.mxu0 0.0
    %330 = vmatpush1.msra.mxu0 %v81
    %331 = vmatprep.subr.mxu0 0.0
    %332 = vmatpush1.msra.mxu0 %v82
    %333 = vmatprep.subr.mxu0 0.0
    %334 = vmatpush1.msra.mxu0 %v83
    %335 = vmatprep.subr.mxu0 0.0
    %336 = vmatpush1.msra.mxu0 %v84
    %337 = vmatprep.subr.mxu0 0.0
    %338 = vmatpush1.msra.mxu0 %v85
    %339 = vmatprep.subr.mxu0 0.0
    %340 = vmatpush1.msra.mxu0 %v86
    %341 = vmatprep.subr.mxu0 0.0
    %342 = vmatpush1.msra.mxu0 %v87
    %343 = vmatprep.subr.mxu0 0.0
    %344 = vmatpush1.msra.mxu0 %v88
    %345 = vmatprep.subr.mxu0 0.0
    %346 = vmatpush1.msra.mxu0 %v89
    %347 = vmatprep.subr.mxu0 0.0
    %348 = vmatpush1.msra.mxu0 %v90
    %349 = vmatprep.subr.mxu0 0.0
    %350 = vmatpush1.msra.mxu0 %v91
    %351 = vmatprep.subr.mxu0 0.0
    %352 = vmatpush1.msra.mxu0 %v92
    %353 = vmatprep.subr.mxu0 0.0
    %354 = vmatpush1.msra.mxu0 %v93
    %355 = vmatprep.subr.mxu0 0.0
    %356 = vmatpush1.msra.mxu0 %v94
    %357 = vmatprep.subr.mxu0 0.0
    %358 = vmatpush1.msra.mxu0 %v95
    %359 = vmatprep.subr.mxu0 0.0
    %360 = vmatpush1.msra.mxu0 0.0
    %361 = vmatprep.subr.mxu0 0.0
    %362 = vmatpush1.msra.mxu0 0.0
    %363 = vmatprep.subr.mxu0 0.0
    %364 = vmatpush1.msra.mxu0 0.0
    %365 = vmatprep.subr.mxu0 0.0
    %366 = vmatpush1.msra.mxu0 0.0
    %367 = vmatprep.subr.mxu0 0.0
    %368 = vmatpush1.msra.mxu0 0.0
    %369 = vmatprep.subr.mxu0 0.0
    %370 = vmatpush1.msra.mxu0 0.0
    %371 = vmatprep.subr.mxu0 0.0
    %372 = vmatpush1.msra.mxu0 0.0
    %373 = vmatprep.subr.mxu0 0.0
    %374 = vmatpush1.msra.mxu0 0.0
    %375 = vmatprep.subr.mxu0 0.0
    %376 = vmatpush1.msra.mxu0 0.0
    %377 = vmatprep.subr.mxu0 0.0
    %378 = vmatpush1.msra.mxu0 0.0
    %379 = vmatprep.subr.mxu0 0.0
    %380 = vmatpush1.msra.mxu0 0.0
    %381 = vmatprep.subr.mxu0 0.0
    %382 = vmatpush1.msra.mxu0 0.0
    %383 = vmatprep.subr.mxu0 0.0
    %384 = vmatpush1.msra.mxu0 0.0
    %385 = vmatprep.subr.mxu0 0.0
    %386 = vmatpush1.msra.mxu0 0.0
    %387 = vmatprep.subr.mxu0 0.0
    %388 = vmatpush1.msra.mxu0 0.0
    %389 = vmatprep.subr.mxu0 0.0
    %390 = vmatpush1.msra.mxu0 0.0
    %391 = vmatprep.mubr.f32.mxu0 0.0
    %392 = vmatmul.mubr.f32.gmra.mrb[0].mxu0 %v79
    %v393 = vpop.f32.mrb[0].mxu0
    %v394 = vadd.f32 %v324, %v393
    %v395 = vpop.f32.mrb[0].mxu0
    %396 = vdwg.mxu0
    %v397 = vadd.f32 %v256, %v394
    %398 = vst [vmem:[#allocation3] sm:$0xff] %v397
    // Predicated region
    $region38: #{tpu_custom_call.1} parent=1 // pred_check
      %p399 = pneg %p72
    $region39: #{tpu_custom_call.1} parent=1 // pred_check_branch
      %401 = sbr.rel (%p399) target = $region41
    $region40: #{tpu_custom_call.1} parent=1 // pred_region
      %v402 = vld [vmem:[#allocation2] sm:$0xff]
      %403 = vst [vmem:[#allocation12] sm:$0xff] %v402
      %v404 = vld [vmem:[#allocation3] sm:$0xff]
      %405 = vst [vmem:[#allocation13] sm:$0xff] %v404
    $region41: #{tpu_custom_call.1} parent=1 // pred_fallthru
      _
    // Predicated region
    $region42: #{tpu_custom_call.1} parent=1 // pred_check
      _
    $region43: #{tpu_custom_call.1} parent=1 // pred_check_branch
      %407 = sbr.rel (0) target = $region45
    $region44: #{tpu_custom_call.1} parent=1 // pred_region
      %s409 = ssub.s32 128, 128
      %410 = vsyncadd [#allocation6], %s409
      %s412 = sshll.u32 [#allocation12], 4
      %s413 = int_to_ptr.vmem [resolvable:$true] %s412
      %415 = dma.vmem_to_hbm [thread:$0]  %s413, 128, %s4, [#allocation6]
    $region45: #{tpu_custom_call.1} parent=1 // pred_fallthru
      _
    // Predicated region
    $region46: #{tpu_custom_call.1} parent=1 // pred_check
      _
    $region47: #{tpu_custom_call.1} parent=1 // pred_check_branch
      %417 = sbr.rel (0) target = $region49
    $region48: #{tpu_custom_call.1} parent=1 // pred_region
      %s419 = ssub.s32 128, 128
      %420 = vsyncadd [#allocation14], %s419
      %s422 = sshll.u32 [#allocation13], 4
      %s423 = int_to_ptr.vmem [resolvable:$true] %s422
      %425 = dma.vmem_to_hbm [thread:$0]  %s423, 128, %s5, [#allocation14]
    $region49: #{tpu_custom_call.1} parent=1 // pred_fallthru
      _
    // Predicated region
    $region50: #{tpu_custom_call.1} parent=1 // pred_check
      _
    $region51: #{tpu_custom_call.1} parent=1 // pred_check_branch
      %427 = sbr.rel (0) target = $region53
    $region52: #{tpu_custom_call.1} parent=1 // pred_region
      %428 = dma.done [#allocation6], 128
    $region53: #{tpu_custom_call.1} parent=1 // pred_fallthru
      _
    // Predicated region
    $region54: #{tpu_custom_call.1} parent=1 // pred_check
      _
    $region55: #{tpu_custom_call.1} parent=1 // pred_check_branch
      %430 = sbr.rel (0) target = $region57
    $region56: #{tpu_custom_call.1} parent=1 // pred_region
      %431 = dma.done [#allocation14], 128
    $region57: #{tpu_custom_call.1} parent=1 // pred_fallthru
      _
    %432 = vsyncpa [#allocation5], 1
    %433 = vsyncpa [#allocation8], 1
    %434 = vsyncpa [#allocation11], 1
    %435 = vsyncpa [#allocation6], 1
    %436 = vsyncpa [#allocation14], 1

</llo_original>
